<compile_context>
chip_gen: v5e
topology: v5e:2x2
jax: 0.10.0
libtpu: 0.0.40
codegen_flags: <defaults>
</compile_context>

<pallas_src>
import functools

import jax
import jax.numpy as jnp
from jax.experimental import pallas as pl
from jax.experimental.pallas import tpu as pltpu

_VMEM_LIMIT = 32 * 1024 * 1024  # safe scoped-VMEM request on v5e/v6e/v7x


def _round_up(x, m):
    return ((x + m - 1) // m) * m


# ---------------------------------------------------------------------------
# Pallas kernels
# ---------------------------------------------------------------------------

def _matmul_bias_kernel(a_ref, b_ref, bias_ref, o_ref, acc_ref):
    # Tiled GEMM with f32 accumulator; bias added (and cast) only on the last k step.
    k = pl.program_id(2)

    @pl.when(k == 0)
    def _():
        acc_ref[...] = jnp.zeros_like(acc_ref)

    acc_ref[...] += jnp.dot(a_ref[...], b_ref[...],
                            preferred_element_type=jnp.float32)

    @pl.when(k == pl.num_programs(2) - 1)
    def _():
        o_ref[...] = (acc_ref[...] + bias_ref[...]).astype(o_ref.dtype)


def _bn_stats_kernel(x_ref, sum_ref, sq_ref):
    # Per-channel sum / sum-of-squares accumulated across token tiles ("arbitrary" axis).
    x = x_ref[...]
    s = jnp.sum(x, axis=0, keepdims=True)
    q = jnp.sum(x * x, axis=0, keepdims=True)

    @pl.when(pl.program_id(0) == 0)
    def _():
        sum_ref[...] = jnp.zeros_like(sum_ref)
        sq_ref[...] = jnp.zeros_like(sq_ref)

    sum_ref[...] += s
    sq_ref[...] += q


def _layernorm_kernel(x_ref, g_ref, b_ref, o_ref):
    x = x_ref[...]
    mean = jnp.mean(x, axis=-1, keepdims=True)
    var = jnp.mean((x - mean) ** 2, axis=-1, keepdims=True)
    y = (x - mean) * jax.lax.rsqrt(var + 1e-5) * g_ref[...] + b_ref[...]
    o_ref[...] = y.astype(o_ref.dtype)


def _bn_silu_conv3x3_kernel(x_ref, scale_ref, shift_ref, mask_ref, w_ref, add_ref,
                            o_ref, xs_ref, *, H, W):
    """Fused BatchNorm-apply + SiLU + 3x3 conv (padding=1) + per-batch epilogue add.

    x_ref    : (1, P, Cin) raw (pre-BN) zero-padded image, flattened; P = (H+3)*(W+2)
    scale_ref: (1, Cin)   gamma / sqrt(var + eps)
    shift_ref: (1, Cin)   beta - mean * scale
    mask_ref : (P, 1)     1 on interior pixels, 0 on the pad ring
    w_ref    : (3, 3, Cin, Cout) bf16
    add_ref  : (1, 1, Cout)  conv bias (+ optional time-embedding row)
    o_ref    : (1, L, Cout)  L = H*(W+2); 2 junk columns/row dropped by the wrapper
    xs_ref   : VMEM scratch (P, Cin) f32
    """
    Wp = W + 2
    L = H * Wp
    # BN affine + SiLU on the padded image; mask re-zeroes the pad ring so conv padding
    # stays true zeros (PyTorch pads *after* BN+SiLU).
    y = x_ref[0] * scale_ref[...] + shift_ref[...]
    xs_ref[...] = (y * jax.nn.sigmoid(y)) * mask_ref[...]
    # 9 shifted GEMMs accumulated in f32 (in-kernel im2col -> no 9x HBM blow-up).
    Cout = w_ref.shape[-1]
    acc = jnp.zeros((L, Cout), jnp.float32)
    for kh in range(3):
        for kw in range(3):
            off = kh * Wp + kw
            a = xs_ref[off:off + L, :].astype(jnp.bfloat16)
            acc = acc + jnp.dot(a, w_ref[kh, kw],
                                preferred_element_type=jnp.float32)
    o_ref[0] = (acc + add_ref[0]).astype(o_ref.dtype)


def _attn_kernel(q_ref, kt_ref, v_ref, o_ref, *, scale):
    # One batch element per grid step; all heads handled inside the kernel.
    # K is pre-transposed in the wrapper -> no in-kernel transpose.
    heads = q_ref.shape[1]
    for h in range(heads):
        qh = q_ref[0, h]            # (S, Dh) bf16
        kth = kt_ref[0, h]          # (Dh, S) bf16
        vh = v_ref[0, h]            # (S, Dh) bf16
        s = jnp.dot(qh, kth, preferred_element_type=jnp.float32) * scale
        s = s - jnp.max(s, axis=-1, keepdims=True)
        p = jnp.exp(s)
        p = p * pl.reciprocal(jnp.sum(p, axis=-1, keepdims=True), approx=True)
        o_ref[0, h] = jnp.dot(p.astype(vh.dtype), vh,
                              preferred_element_type=jnp.float32).astype(o_ref.dtype)


# ---------------------------------------------------------------------------
# Pallas wrappers
# ---------------------------------------------------------------------------

def matmul_bias(a, b, bias, *, tm=256, out_dtype=jnp.float32):
    """out = a @ b + bias, tiled over rows, bf16 MXU operands, f32 accumulation."""
    M, K = a.shape
    N = b.shape[1]
    a = a.astype(jnp.bfloat16)
    b = b.astype(jnp.bfloat16)
    bias2 = bias.reshape(1, N).astype(jnp.float32)
    tm = min(tm, _round_up(M, 8))           # tiny-M (e.g. time-embed, M=B) pads to 8 rows
    Mp = _round_up(M, tm)
    if Mp != M:
        a = jnp.pad(a, ((0, Mp - M), (0, 0)))
    out = pl.pallas_call(
        _matmul_bias_kernel,
        out_shape=jax.ShapeDtypeStruct((Mp, N), out_dtype),
        grid=(Mp // tm, 1, 1),               # K/N are small here -> single full blocks
        in_specs=[
            pl.BlockSpec((tm, K), lambda i, j, k: (i, k)),
            pl.BlockSpec((K, N), lambda i, j, k: (k, j)),
            pl.BlockSpec((1, N), lambda i, j, k: (0, j)),
        ],
        out_specs=pl.BlockSpec((tm, N), lambda i, j, k: (i, j)),
        scratch_shapes=[pltpu.VMEM((tm, N), jnp.float32)],
        compiler_params=pltpu.CompilerParams(
            dimension_semantics=("parallel", "parallel", "arbitrary"),
            vmem_limit_bytes=_VMEM_LIMIT,
        ),
    )(a, b, bias2)
    return out[:M] if Mp != M else out


def _bn_stats(x2d, *, tm=512):
    M, C = x2d.shape
    tm = min(tm, _round_up(M, 8))
    Mp = _round_up(M, tm)
    xp = jnp.pad(x2d, ((0, Mp - M), (0, 0))) if Mp != M else x2d  # zero rows: sums unaffected
    s, q = pl.pallas_call(
        _bn_stats_kernel,
        out_shape=(jax.ShapeDtypeStruct((1, C), jnp.float32),
                   jax.ShapeDtypeStruct((1, C), jnp.float32)),
        grid=(Mp // tm,),
        in_specs=[pl.BlockSpec((tm, C), lambda i: (i, 0))],
        out_specs=(pl.BlockSpec((1, C), lambda i: (0, 0)),
                   pl.BlockSpec((1, C), lambda i: (0, 0))),
        compiler_params=pltpu.CompilerParams(dimension_semantics=("arbitrary",)),
    )(xp)
    mean = s / M
    var = jnp.maximum(q / M - mean * mean, 0.0)
    return mean, var


def _bn_scale_shift(x_nhwc, gamma, beta, eps=1e-5):
    """Training-mode BatchNorm2d batch statistics -> per-channel (scale, shift)."""
    B, H, W, C = x_nhwc.shape
    x2d = x_nhwc.reshape(B * H * W, C).astype(jnp.float32)
    mean, var = _bn_stats(x2d)
    scale = gamma.reshape(1, C).astype(jnp.float32) * jax.lax.rsqrt(var + eps)
    shift = beta.reshape(1, C).astype(jnp.float32) - mean * scale
    return scale, shift


def layernorm(x2d, gamma, beta, *, tm=512):
    M, C = x2d.shape
    tm = min(tm, _round_up(M, 8))
    Mp = _round_up(M, tm)
    x2d = x2d.astype(jnp.float32)
    xp = jnp.pad(x2d, ((0, Mp - M), (0, 0))) if Mp != M else x2d
    out = pl.pallas_call(
        _layernorm_kernel,
        out_shape=jax.ShapeDtypeStruct((Mp, C), jnp.bfloat16),  # feeds the qkv GEMM
        grid=(Mp // tm,),
        in_specs=[pl.BlockSpec((tm, C), lambda i: (i, 0)),
                  pl.BlockSpec((1, C), lambda i: (0, 0)),
                  pl.BlockSpec((1, C), lambda i: (0, 0))],
        out_specs=pl.BlockSpec((tm, C), lambda i: (i, 0)),
        compiler_params=pltpu.CompilerParams(dimension_semantics=("parallel",)),
    )(xp, gamma.reshape(1, C).astype(jnp.float32),
      beta.reshape(1, C).astype(jnp.float32))
    return out[:M] if Mp != M else out


def bn_silu_conv3x3(x_nhwc, scale, shift, w, b, *, row_add=None):
    """Fused BN-apply + SiLU + 3x3 conv (padding=1), PyTorch weight layout (Cout,Cin,3,3).

    The raw (pre-BN) zero-padded image is flattened so each of the 9 taps is one
    contiguous row-slice inside the kernel (no im2col in HBM).  BN affine + SiLU is
    applied inside the kernel (interior mask keeps the pad ring zero), and a per-batch
    row vector (conv bias + optional time-embedding) is added in the epilogue.
    Two junk columns per image row are dropped after the kernel; a following residual
    add fuses into that pass under XLA.
    """
    B, H, W, Cin = x_nhwc.shape
    Cout = w.shape[0]
    Wp = W + 2
    L = H * Wp
    P = (H + 3) * Wp  # one extra zero row so every tap slice stays in-bounds
    xp = jnp.pad(x_nhwc.astype(jnp.float32), ((0, 0), (1, 2), (1, 1), (0, 0)))
    xf = xp.reshape(B, P, Cin)
    wk = jnp.transpose(w, (2, 3, 1, 0)).astype(jnp.bfloat16)   # (3, 3, Cin, Cout)

    # per-batch epilogue addend = conv bias (+ time-embedding row)
    add = jnp.broadcast_to(b.reshape(1, Cout).astype(jnp.float32), (B, Cout))
    if row_add is not None:
        add = add + row_add.astype(jnp.float32)
    add = add.reshape(B, 1, Cout)

    # interior mask: 1 on real pixels, 0 on the zero-pad ring (shared across batch)
    idx = jnp.arange(P, dtype=jnp.int32)
    r = idx // Wp
    c = idx % Wp
    interior = (r >= 1) & (r <= H) & (c >= 1) & (c <= W)
    mask = interior.astype(jnp.float32).reshape(P, 1)

    kernel = functools.partial(_bn_silu_conv3x3_kernel, H=H, W=W)
    out_flat = pl.pallas_call(
        kernel,
        out_shape=jax.ShapeDtypeStruct((B, L, Cout), jnp.float32),
        grid=(B,),
        in_specs=[
            pl.BlockSpec((1, P, Cin), lambda i: (i, 0, 0)),
            pl.BlockSpec((1, Cin), lambda i: (0, 0)),
            pl.BlockSpec((1, Cin), lambda i: (0, 0)),
            pl.BlockSpec((P, 1), lambda i: (0, 0)),
            pl.BlockSpec((3, 3, Cin, Cout), lambda i: (0, 0, 0, 0)),
            pl.BlockSpec((1, 1, Cout), lambda i: (i, 0, 0)),
        ],
        out_specs=pl.BlockSpec((1, L, Cout), lambda i: (i, 0, 0)),
        scratch_shapes=[pltpu.VMEM((P, Cin), jnp.float32)],
        compiler_params=pltpu.CompilerParams(
            dimension_semantics=("parallel",),
            vmem_limit_bytes=_VMEM_LIMIT,
        ),
    )(xf, scale, shift, mask, wk, add)
    # drop the 2 junk columns per image row (valid outputs are columns 0..W-1)
    return out_flat.reshape(B, H, Wp, Cout)[:, :, :W, :]


def conv1x1(x_nhwc, w, b):
    # w: (Cout, Cin, 1, 1)
    B, H, W, Cin = x_nhwc.shape
    Cout = w.shape[0]
    wmat = w.reshape(Cout, Cin).T
    out = matmul_bias(x_nhwc.reshape(B * H * W, Cin), wmat, b)
    return out.reshape(B, H, W, Cout)


def conv_transpose2x2(x_nhwc, w, b):
    # PyTorch ConvTranspose2d(k=2, s=2); w: (Cin, Cout, 2, 2). Stride == kernel -> no overlap.
    B, H, W, Cin = x_nhwc.shape
    Cout = w.shape[1]
    wmat = jnp.transpose(w, (0, 2, 3, 1)).reshape(Cin, 4 * Cout)  # column = (kh*2+kw)*Cout + o
    bias4 = jnp.tile(b, 4)
    out = matmul_bias(x_nhwc.reshape(B * H * W, Cin), wmat, bias4)
    out = out.reshape(B, H, W, 2, 2, Cout)
    out = jnp.transpose(out, (0, 1, 3, 2, 4, 5)).reshape(B, 2 * H, 2 * W, Cout)
    return out


def attention_core(q, k, v, heads):
    # q, k, v: (B, S, C) float32; all heads of a batch handled in one grid step.
    B, S, C = q.shape
    Dh = C // heads
    scale = 1.0 / (Dh ** 0.5)
    qh = q.reshape(B, S, heads, Dh).transpose(0, 2, 1, 3).astype(jnp.bfloat16)
    kt = k.reshape(B, S, heads, Dh).transpose(0, 2, 3, 1).astype(jnp.bfloat16)  # pre-transposed K
    vh = v.reshape(B, S, heads, Dh).transpose(0, 2, 1, 3).astype(jnp.bfloat16)
    kernel = functools.partial(_attn_kernel, scale=scale)
    o = pl.pallas_call(
        kernel,
        out_shape=jax.ShapeDtypeStruct((B, heads, S, Dh), jnp.float32),
        grid=(B,),
        in_specs=[pl.BlockSpec((1, heads, S, Dh), lambda i: (i, 0, 0, 0)),
                  pl.BlockSpec((1, heads, Dh, S), lambda i: (i, 0, 0, 0)),
                  pl.BlockSpec((1, heads, S, Dh), lambda i: (i, 0, 0, 0))],
        out_specs=pl.BlockSpec((1, heads, S, Dh), lambda i: (i, 0, 0, 0)),
        compiler_params=pltpu.CompilerParams(dimension_semantics=("parallel",)),
    )(qh, kt, vh)
    return o.transpose(0, 2, 1, 3).reshape(B, S, C)


# ---------------------------------------------------------------------------
# Module forward passes (NHWC)
# ---------------------------------------------------------------------------

def self_attention(x_nhwc, p, heads=4):
    B, H, W, C = x_nhwc.shape
    S = H * W
    xm = x_nhwc.reshape(B * S, C)                  # token order h*W+w == PyTorch reshape/permute
    xln = layernorm(xm, p["ln_g"], p["ln_b"])
    qkv = matmul_bias(xln, p["in_proj_w"].T, p["in_proj_b"])   # (B*S, 3C)
    q, k, v = jnp.split(qkv, 3, axis=-1)
    o = attention_core(q.reshape(B, S, C), k.reshape(B, S, C),
                       v.reshape(B, S, C), heads)              # (B, S, C)
    o = matmul_bias(o.reshape(B * S, C), p["out_proj_w"].T, p["out_proj_b"])
    return o.reshape(B, H, W, C)


def double_conv(x_nhwc, time_vec, p, has_attention):
    x_old = x_nhwc
    # conv1 block: BN -> SiLU -> Conv3x3, all fused in one kernel; the time-embedding
    # broadcast rides the conv epilogue addend.
    scale1, shift1 = _bn_scale_shift(x_nhwc, p["bn1_g"], p["bn1_b"])
    t = matmul_bias(jax.nn.silu(time_vec), p["embed_w"].T, p["embed_b"])  # (B, out_c)
    h = bn_silu_conv3x3(x_nhwc, scale1, shift1, p["conv1_w"], p["conv1_b"], row_add=t)
    # conv2 block: BN -> SiLU -> Conv3x3 fused; residual 1x1 conv added on the result
    scale2, shift2 = _bn_scale_shift(h, p["bn2_g"], p["bn2_b"])
    res = conv1x1(x_old, p["res_w"], p["res_b"])
    h = bn_silu_conv3x3(h, scale2, shift2, p["conv2_w"], p["conv2_b"]) + res
    if has_attention:
        h = h + self_attention(h, p)
    return h


def decoder_forward(x_list_nchw, time_vec, params, use_attention):
    # inputs NCHW (PyTorch convention) -> NHWC for kernels -> NCHW output
    xs = [jnp.transpose(x, (0, 2, 3, 1)).astype(jnp.float32) for x in x_list_nchw]
    x_last = xs[-1]
    for i, p in enumerate(params):
        x_up = conv_transpose2x2(x_last, p["up_w"], p["up_b"])
        skip = xs[-i - 2]
        x_cat = jnp.concatenate([x_up, skip], axis=-1)   # cat along channels (dim=1 in NCHW)
        x_last = double_conv(x_cat, time_vec, p, use_attention[i])
    return jnp.transpose(x_last, (0, 3, 1, 2))


# ---------------------------------------------------------------------------
# Deterministic parameter init (shapes follow the PyTorch __init__)
# ---------------------------------------------------------------------------

def init_decoder_params(key, in_channels, time_dim, channels_list, use_attention):
    params = []
    prev = in_channels
    for out_c, attn in zip(channels_list, use_attention):
        key, *ks = jax.random.split(key, 8)
        cin = 2 * prev
        p = {
            # UpModule.up: ConvTranspose2d(prev, prev, k=2, s=2)
            "up_w": jax.random.normal(ks[0], (prev, prev, 2, 2), jnp.float32) * 0.1,
            "up_b": jnp.zeros((prev,), jnp.float32),
            # DoubleConv(cin, out_c)
            "bn1_g": jnp.ones((cin,), jnp.float32),
            "bn1_b": jnp.zeros((cin,), jnp.float32),
            "conv1_w": jax.random.normal(ks[1], (out_c, cin, 3, 3), jnp.float32) * 0.1,
            "conv1_b": jnp.zeros((out_c,), jnp.float32),
            "bn2_g": jnp.ones((out_c,), jnp.float32),
            "bn2_b": jnp.zeros((out_c,), jnp.float32),
            "conv2_w": jax.random.normal(ks[2], (out_c, out_c, 3, 3), jnp.float32) * 0.1,
            "conv2_b": jnp.zeros((out_c,), jnp.float32),
            "embed_w": jax.random.normal(ks[3], (out_c, time_dim), jnp.float32) * 0.1,
            "embed_b": jnp.zeros((out_c,), jnp.float32),
            "res_w": jax.random.normal(ks[4], (out_c, cin, 1, 1), jnp.float32) * 0.1,
            "res_b": jnp.zeros((out_c,), jnp.float32),
        }
        if attn:
            p["ln_g"] = jnp.ones((out_c,), jnp.float32)
            p["ln_b"] = jnp.zeros((out_c,), jnp.float32)
            p["in_proj_w"] = jax.random.normal(ks[5], (3 * out_c, out_c), jnp.float32) * 0.1
            p["in_proj_b"] = jnp.zeros((3 * out_c,), jnp.float32)
            p["out_proj_w"] = jax.random.normal(ks[6], (out_c, out_c), jnp.float32) * 0.1
            p["out_proj_b"] = jnp.zeros((out_c,), jnp.float32)
        params.append(p)
        prev = out_c
    return params


# ---------------------------------------------------------------------------
# Main
# ---------------------------------------------------------------------------

if __name__ == "__main__":
    key = jax.random.PRNGKey(0)

    B = 2
    in_channels = 16
    time_dim = 32
    channels_list = [16, 8, 8, 8]
    use_attention = [True, False, False, False]
    Hb = Wb = 2  # bottleneck spatial size

    kp, kx = jax.random.split(key)
    params = init_decoder_params(kp, in_channels, time_dim, channels_list, use_attention)

    keys = jax.random.split(kx, len(channels_list) + 2)
    # Build skip connections so each UpModule's concat lines up:
    # skip for layer i must have `prev_channels` channels at the upsampled resolution.
    skips = []
    prev = in_channels
    h = Hb
    for i, out_c in enumerate(channels_list):
        h *= 2
        skips.append(jax.random.normal(keys[i], (B, prev, h, h), jnp.float32))
        prev = out_c
    bottom = jax.random.normal(keys[-1], (B, in_channels, Hb, Wb), jnp.float32)
    time_vec = jax.random.normal(keys[-2], (B, time_dim), jnp.float32)
    # x_list: [shallowest skip, ..., deepest skip, bottleneck feature]
    x_list = skips[::-1] + [bottom]

    out = decoder_forward(x_list, time_vec, params, use_attention)
    out = jax.block_until_ready(out)

    final_hw = Hb * (2 ** len(channels_list))
    assert out.shape == (B, channels_list[-1], final_hw, final_hw), out.shape
    assert bool(jnp.all(jnp.isfinite(out)))
    print("KERNEL_OK")
</pallas_src>

<mosaic_0001>
module attributes {stable_mosaic.version = 11 : i64} {
  func.func @_matmul_bias_kernel(%arg0: i32, %arg1: i32, %arg2: i32, %arg3: memref<8x16xbf16, #tpu.memory_space<vmem>>, %arg4: memref<16x64xbf16, #tpu.memory_space<vmem>>, %arg5: memref<1x64xf32, #tpu.memory_space<vmem>>, %arg6: memref<8x64xf32, #tpu.memory_space<vmem>>, %arg7: memref<8x64xf32, #tpu.memory_space<vmem>>) attributes {dimension_semantics = [#tpu.dimension_semantics<parallel>, #tpu.dimension_semantics<parallel>, #tpu.dimension_semantics<arbitrary>], iteration_bounds = array<i64: 1, 1, 1>, scalar_prefetch = 0 : i64, scratch_operands = 1 : i64, tpu.core_type = #tpu.core_type<tc>, window_params = [{transform_indices = @transform_0, window_bounds = array<i64: 8, 16>}, {transform_indices = @transform_1, window_bounds = array<i64: 16, 64>}, {transform_indices = @transform_2, window_bounds = array<i64: 1, 64>}, {transform_indices = @transform_3, window_bounds = array<i64: 8, 64>}]} {
    %c0_i32 = arith.constant 0 : i32
    %0 = arith.cmpi eq, %arg2, %c0_i32 : i32
    %1 = arith.extui %0 : i1 to i32
    %c0_i32_0 = arith.constant 0 : i32
    %2 = arith.cmpi ne, %1, %c0_i32_0 : i32
    scf.if %2 {
      %cst_10 = arith.constant 0.000000e+00 : f32
      %12 = vector.broadcast %cst_10 : f32 to vector<8x64xf32>
      %c0_11 = arith.constant 0 : index
      %c0_12 = arith.constant 0 : index
      %13 = vector.load %arg7[%c0_11, %c0_12] : memref<8x64xf32, #tpu.memory_space<vmem>>, vector<8x64xf32>
      tpu.vector_store %arg7[%c0_11, %c0_12], %12 {strides = array<i32>} : memref<8x64xf32, #tpu.memory_space<vmem>>, vector<8x64xf32>,
    } else {
    }
    %c0 = arith.constant 0 : index
    %c0_1 = arith.constant 0 : index
    %3 = vector.load %arg7[%c0, %c0_1] : memref<8x64xf32, #tpu.memory_space<vmem>>, vector<8x64xf32>
    %c0_2 = arith.constant 0 : index
    %c0_3 = arith.constant 0 : index
    %4 = vector.load %arg3[%c0_2, %c0_3] : memref<8x16xbf16, #tpu.memory_space<vmem>>, vector<8x16xbf16>
    %c0_4 = arith.constant 0 : index
    %c0_5 = arith.constant 0 : index
    %5 = vector.load %arg4[%c0_4, %c0_5] : memref<16x64xbf16, #tpu.memory_space<vmem>>, vector<16x64xbf16>
    %cst = arith.constant dense<0.000000e+00> : vector<8x64xf32>
    %6 = tpu.matmul %4, %5, %cst {dimension_numbers = #tpu.dot_dimension_numbers<[1], [0], [0], [1], [0, 0, 1, 1], [], []>} : vector<8x16xbf16>, vector<16x64xbf16>, vector<8x64xf32> -> vector<8x64xf32>
    %7 = arith.addf %3, %6 : vector<8x64xf32>
    %c0_6 = arith.constant 0 : index
    %c0_7 = arith.constant 0 : index
    %8 = vector.load %arg7[%c0_6, %c0_7] : memref<8x64xf32, #tpu.memory_space<vmem>>, vector<8x64xf32>
    tpu.vector_store %arg7[%c0_6, %c0_7], %7 {strides = array<i32>} : memref<8x64xf32, #tpu.memory_space<vmem>>, vector<8x64xf32>,
    %c0_i32_8 = arith.constant 0 : i32
    %9 = arith.cmpi eq, %arg2, %c0_i32_8 : i32
    %10 = arith.extui %9 : i1 to i32
    %c0_i32_9 = arith.constant 0 : i32
    %11 = arith.cmpi ne, %10, %c0_i32_9 : i32
    scf.if %11 {
      %c0_10 = arith.constant 0 : index
      %c0_11 = arith.constant 0 : index
      %12 = vector.load %arg7[%c0_10, %c0_11] : memref<8x64xf32, #tpu.memory_space<vmem>>, vector<8x64xf32>
      %c0_12 = arith.constant 0 : index
      %c0_13 = arith.constant 0 : index
      %13 = vector.load %arg5[%c0_12, %c0_13] : memref<1x64xf32, #tpu.memory_space<vmem>>, vector<1x64xf32>
      %14 = vector.broadcast %13 : vector<1x64xf32> to vector<8x64xf32>
      %15 = arith.addf %12, %14 : vector<8x64xf32>
      %c0_14 = arith.constant 0 : index
      %c0_15 = arith.constant 0 : index
      %16 = vector.load %arg6[%c0_14, %c0_15] : memref<8x64xf32, #tpu.memory_space<vmem>>, vector<8x64xf32>
      tpu.vector_store %arg6[%c0_14, %c0_15], %15 {strides = array<i32>} : memref<8x64xf32, #tpu.memory_space<vmem>>, vector<8x64xf32>,
    } else {
    }
    return
  }
  func.func @transform_0(%arg0: i32, %arg1: i32, %arg2: i32) -> (i32, i32) {
    %c0_i32 = arith.constant 0 : i32
    return %arg0, %arg2 : i32, i32
  }
  func.func @transform_1(%arg0: i32, %arg1: i32, %arg2: i32) -> (i32, i32) {
    %c0_i32 = arith.constant 0 : i32
    return %arg2, %arg1 : i32, i32
  }
  func.func @transform_2(%arg0: i32, %arg1: i32, %arg2: i32) -> (i32, i32) {
    %c0_i32 = arith.constant 0 : i32
    %c0_i32_0 = arith.constant 0 : i32
    return %c0_i32, %arg1 : i32, i32
  }
  func.func @transform_3(%arg0: i32, %arg1: i32, %arg2: i32) -> (i32, i32) {
    %c0_i32 = arith.constant 0 : i32
    return %arg0, %arg1 : i32, i32
  }
}

</mosaic_0001>

<llo_original>
// kernel: tpu_custom_call.1
$region0: #{tpu_custom_call.1}
  #allocation0 [shape = 'u32[]', space=smem, size = 0x4, offset = 0x4, fixed_abs, tag = 'smem constant byte address 0x4 - core index']
  #allocation1 [shape = 'u32[72,128]{1,0:T(1,128)}', space=vmem, size = 0x9000, scoped, tag = 'internal scratch']
  #allocation2 [shape = 'f32[8,64]{1,0:T(8,128)}', space=vmem, size = 0x1000, scoped, tag = 'scratch operand']
  %s0 = inlined_call_operand.hbm [shape: bf16[8,16], index: 0, kind: input, shape index: {}]
  %s1 = inlined_call_operand.hbm [shape: bf16[16,64], index: 1, kind: input, shape index: {}]
  %s2 = inlined_call_operand.vmem [shape: f32[1,64], index: 2, kind: input, shape index: {}]
  %s3 = inlined_call_operand.hbm [shape: f32[8,64], index: 3, kind: output, shape index: {}]
  %s4 = sld [smem:[#allocation0]]
  $region38: #{tpu_custom_call.1} parent=0
    _
  %s6 = ssub.s32 1, %s4
  %s7 = scalar_select 0, %s6, %s4
  $region1: #{tpu_custom_call.1} parent=0
    #allocation3 [shape = 'u8[2048]{0}', space=vmem, size = 0x800, scoped, tag = 'input window, operand 0, single buffered']
    #allocation4 [shape = 's32[1]{0}', space=sflag, size = 0x4, scoped, tag = 'scoped memory for tpu_custom_call.1']
    #allocation5 [shape = 's32[1]{0}', space=sflag, size = 0x4, scoped, tag = 'scoped memory for tpu_custom_call.1']
    #allocation6 [shape = 'u8[4096]{0}', space=vmem, size = 0x1000, scoped, tag = 'input window, operand 1, single buffered']
    #allocation7 [shape = 's32[1]{0}', space=sflag, size = 0x4, scoped, tag = 'scoped memory for tpu_custom_call.1']
    #allocation8 [shape = 'u8[4096]{0}', space=vmem, size = 0x1000, scoped, tag = 'output window, operand 0, single buffered']
    %8 = vsyncpa [#allocation4], 0
    %9 = vsyncpa [#allocation7], 0
    %10 = vsyncpa [#allocation5], 0
    // Predicated region
    $region2: #{tpu_custom_call.1} parent=1 // pred_check
      _
    $region3: #{tpu_custom_call.1} parent=1 // pred_check_branch
      %12 = sbr.rel (0) target = $region5
    $region4: #{tpu_custom_call.1} parent=1 // pred_region
      %14 = vsyncadd [#allocation4], 0
      %s16 = sshll.u32 %s0, 4
      %s17 = int_to_ptr.hbm [resolvable:$true] %s16
      %s18 = sshll.u32 [#allocation3], 4
      %s19 = int_to_ptr.vmem [resolvable:$true] %s18
      %21 = dma.hbm_to_vmem [thread:$0]  %s17, 64, %s19, [#allocation4]
    $region5: #{tpu_custom_call.1} parent=1 // pred_fallthru
      _
    // Predicated region
    $region6: #{tpu_custom_call.1} parent=1 // pred_check
      _
    $region7: #{tpu_custom_call.1} parent=1 // pred_check_branch
      %23 = sbr.rel (0) target = $region9
    $region8: #{tpu_custom_call.1} parent=1 // pred_region
      %25 = vsyncadd [#allocation7], 0
      %s26 = sshll.u32 %s1, 4
      %s27 = int_to_ptr.hbm [resolvable:$true] %s26
      %s28 = sshll.u32 [#allocation6], 4
      %s29 = int_to_ptr.vmem [resolvable:$true] %s28
      %34 = dma.hbm_to_vmem [thread:$0]  %s27, 128, %s29, [#allocation7], 64, 64, 4
    $region9: #{tpu_custom_call.1} parent=1 // pred_fallthru
      _
    // Predicated region
    $region10: #{tpu_custom_call.1} parent=1 // pred_check
      _
    $region11: #{tpu_custom_call.1} parent=1 // pred_check_branch
      %36 = sbr.rel (0) target = $region13
    $region12: #{tpu_custom_call.1} parent=1 // pred_region
      _
    $region13: #{tpu_custom_call.1} parent=1 // pred_fallthru
      _
    // Predicated region
    $region14: #{tpu_custom_call.1} parent=1 // pred_check
      _
    $region15: #{tpu_custom_call.1} parent=1 // pred_check_branch
      %38 = sbr.rel (0) target = $region17
    $region16: #{tpu_custom_call.1} parent=1 // pred_region
      %40 = dma.done [#allocation4], 64
    $region17: #{tpu_custom_call.1} parent=1 // pred_fallthru
      _
    // Predicated region
    $region18: #{tpu_custom_call.1} parent=1 // pred_check
      _
    $region19: #{tpu_custom_call.1} parent=1 // pred_check_branch
      %42 = sbr.rel (0) target = $region21
    $region20: #{tpu_custom_call.1} parent=1 // pred_region
      %44 = dma.done [#allocation7], 128
    $region21: #{tpu_custom_call.1} parent=1 // pred_fallthru
      _
    %p46 = scmp.eq.s32.totalorder 0, 0
    // Predicated region
    $region22: #{tpu_custom_call.1} parent=1 // pred_check
      %p47 = pneg %p46
    $region23: #{tpu_custom_call.1} parent=1 // pred_check_branch
      %49 = sbr.rel (%p47) target = $region25
    $region24: #{tpu_custom_call.1} parent=1 // pred_region
      %vm50 = vcmask 523264
      %51 = vst.msk [vmem:[#allocation2] sm:$0xff] %vm50, 0.0
    $region25: #{tpu_custom_call.1} parent=1 // pred_fallthru
      _
    %v52 = vld [vmem:[#allocation2] sm:$0xff]
    %v53 = vld [vmem:[#allocation3] sm:$0xf]
    %v54 = vld [vmem:[#allocation6] sm:$0xf]
    %v55 = vld [vmem:[#allocation6 + $0x4] sm:$0xf]
    %v58 = vunpack.c.l.b16 %v54
    %v59 = vunpack.c.l.b16 %v55
    %v60 = vpack.c.b16 %v59, %v58
    %vm62 = vcmask 130048
    %v64 = vsel %vm62, %v53, 0
    %66 = vmatpush.bf16.msra.mxu0 0
    %67 = vmatpush.bf16.msra.mxu0 0
    %68 = vmatpush.bf16.msra.mxu0 0
    %69 = vmatpush.bf16.msra.mxu0 0
    %70 = vmatpush.bf16.msra.mxu0 0
    %71 = vmatpush.bf16.msra.mxu0 0
    %72 = vmatpush.bf16.msra.mxu0 0
    %73 = vmatpush.bf16.msra.mxu0 %v60
    %74 = vmatmul.bf16.gmra.mxu0 %v64
    %v75 = vpop.f32.mrf.mxu0
    %v76 = vadd.f32 0.0, %v75
    %v77 = vpop.f32.mrf.mxu0
    %78 = vdwg.mxu0
    %v79 = vadd.f32 %v52, %v76
    %vm80 = vcmask 523264
    %81 = vst.msk [vmem:[#allocation2] sm:$0xff] %vm80, %v79
    // Predicated region
    $region26: #{tpu_custom_call.1} parent=1 // pred_check
      %p82 = pneg %p46
    $region27: #{tpu_custom_call.1} parent=1 // pred_check_branch
      %84 = sbr.rel (%p82) target = $region29
    $region28: #{tpu_custom_call.1} parent=1 // pred_region
      %v85 = vld [vmem:[#allocation2] sm:$0xff]
      %v86 = vld [vmem:[%s2] sm:$0x1]
      %v88 = vperm.slane %v86, 0
      %v90 = vadd.f32 %v85, %v88
      %91 = vst.msk [vmem:[#allocation8] sm:$0xff] %vm80, %v90
    $region29: #{tpu_custom_call.1} parent=1 // pred_fallthru
      _
    // Predicated region
    $region30: #{tpu_custom_call.1} parent=1 // pred_check
      _
    $region31: #{tpu_custom_call.1} parent=1 // pred_check_branch
      %93 = sbr.rel (0) target = $region33
    $region32: #{tpu_custom_call.1} parent=1 // pred_region
      %95 = vsyncadd [#allocation5], 0
      %s97 = sshll.u32 [#allocation8], 4
      %s98 = int_to_ptr.vmem [resolvable:$true] %s97
      %s99 = sshll.u32 %s3, 4
      %s100 = int_to_ptr.hbm [resolvable:$true] %s99
      %102 = dma.vmem_to_hbm [thread:$0]  %s98, 128, %s100, [#allocation5]
    $region33: #{tpu_custom_call.1} parent=1 // pred_fallthru
      _
    // Predicated region
    $region34: #{tpu_custom_call.1} parent=1 // pred_check
      _
    $region35: #{tpu_custom_call.1} parent=1 // pred_check_branch
      %104 = sbr.rel (0) target = $region37
    $region36: #{tpu_custom_call.1} parent=1 // pred_region
      %106 = dma.done [#allocation5], 128
    $region37: #{tpu_custom_call.1} parent=1 // pred_fallthru
      _
    %107 = vsyncpa [#allocation4], 1
    %108 = vsyncpa [#allocation7], 1
    %109 = vsyncpa [#allocation5], 1

</llo_original>
